<compile_context>
chip_gen: v5e
topology: v5e:2x2
jax: 0.10.0
libtpu: 0.0.40
codegen_flags: <defaults>
</compile_context>

<pallas_src>
import functools

import jax
import jax.numpy as jnp
from jax.experimental import pallas as pl
from jax.experimental.pallas import tpu as pltpu

LANE = 128
NCORES = 2  # leading "parallel" grid axis; gives ~2x on dual-TC chips (v7x)


def _counts_kernel(o_ref, t_ref, tp_ref, fp_ref, fn_ref,
                   tp_acc, fp_acc, fn_acc,
                   *, rows, tile_rows, steps_per_core, need_mask):
    c = pl.program_id(0)
    i = pl.program_id(1)

    @pl.when(i == 0)
    def _init():
        tp_acc[...] = jnp.zeros_like(tp_acc)
        fp_acc[...] = jnp.zeros_like(fp_acc)
        fn_acc[...] = jnp.zeros_like(fn_acc)

    # Upcast in-register (inputs stay in their native dtype in HBM).
    o = o_ref[...].astype(jnp.float32)
    t = t_ref[...].astype(jnp.float32)

    # torch.where(outputs >= 0.5, 1.0, 0.0)
    ob = jnp.where(o >= 0.5, jnp.float32(1.0), jnp.float32(0.0))

    pos = (t == 1.0).astype(jnp.int32)    # target is a positive
    neq = (ob != t).astype(jnp.int32)     # binarized prediction disagrees

    fn_t = pos * neq                      # positive & wrong
    tp_t = pos - fn_t                     # positive & right
    fp_t = neq - fn_t                     # negative & wrong

    if need_mask:
        # Mask rows beyond the real data (ragged last block / overshoot core).
        base = (c * steps_per_core + i) * tile_rows
        row = base + jax.lax.broadcasted_iota(jnp.int32, (tile_rows, LANE), 0)
        valid = (row < rows).astype(jnp.int32)
        tp_t = tp_t * valid
        fp_t = fp_t * valid
        fn_t = fn_t * valid

    tp_acc[...] += tp_t
    fp_acc[...] += fp_t
    fn_acc[...] += fn_t

    @pl.when(i == pl.num_programs(1) - 1)
    def _finalize():
        tp_ref[...] = jnp.sum(tp_acc[...], keepdims=True)[None]
        fp_ref[...] = jnp.sum(fp_acc[...], keepdims=True)[None]
        fn_ref[...] = jnp.sum(fn_acc[...], keepdims=True)[None]


def _counts(outputs, targets, tile_rows=1024):
    o = outputs.reshape(-1)
    t = targets.reshape(-1)
    n = o.shape[0]

    # Only pad to a multiple of 128 lanes when strictly needed (image-shaped
    # inputs are typically already divisible, so no HBM copy is made).
    # Padded zeros binarize to 0 == 0-target, so they contribute nothing.
    rem = n % LANE
    if rem:
        # TODO(synk): the rare non-128-divisible case still materializes one
        # padded copy of each input; a split main+tail kernel would avoid it.
        pad = LANE - rem
        o = jnp.pad(o, (0, pad))
        t = jnp.pad(t, (0, pad))

    rows = o.shape[0] // LANE
    o2 = o.reshape(rows, LANE)
    t2 = t.reshape(rows, LANE)

    # Tile sizing: big tiles amortize per-step overhead; clamp to the array
    # and keep a multiple of 8 sublanes (or use the full extent).
    tr = min(tile_rows, rows)
    if tr < rows:
        tr = max(8, (tr // 8) * 8)
    num_blocks = pl.cdiv(rows, tr)
    steps_per_core = pl.cdiv(num_blocks, NCORES)
    covered_rows = NCORES * steps_per_core * tr
    need_mask = covered_rows != rows

    def row_block(c, i):
        # Clamp so overshoot steps re-read the last valid block (fully masked
        # in-kernel) instead of DMA-ing out of bounds.
        return (jnp.minimum(c * steps_per_core + i, num_blocks - 1), 0)

    tile_spec = pl.BlockSpec((tr, LANE), row_block)
    out_spec = pl.BlockSpec((1, 1, 1), lambda c, i: (c, 0, 0))

    kernel = functools.partial(
        _counts_kernel,
        rows=rows,
        tile_rows=tr,
        steps_per_core=steps_per_core,
        need_mask=need_mask,
    )

    in_bytes = (o2.size * o2.dtype.itemsize) + (t2.size * t2.dtype.itemsize)
    cost = pl.CostEstimate(
        flops=8 * rows * LANE, transcendentals=0, bytes_accessed=in_bytes)

    out_sds = jax.ShapeDtypeStruct((NCORES, 1, 1), jnp.int32)
    tp, fp, fn = pl.pallas_call(
        kernel,
        out_shape=(out_sds, out_sds, out_sds),
        grid_spec=pltpu.PrefetchScalarGridSpec(
            num_scalar_prefetch=0,
            grid=(NCORES, steps_per_core),
            in_specs=[tile_spec, tile_spec],
            out_specs=(out_spec, out_spec, out_spec),
            scratch_shapes=[pltpu.VMEM((tr, LANE), jnp.int32)] * 3,
        ),
        compiler_params=pltpu.CompilerParams(
            dimension_semantics=("parallel", "arbitrary")),
        cost_estimate=cost,
    )(o2, t2)

    tp = jnp.sum(tp).astype(jnp.float32)
    fp = jnp.sum(fp).astype(jnp.float32)
    fn = jnp.sum(fn).astype(jnp.float32)
    return tp, fp, fn


def fscore(outputs, targets, beta=1, tile_rows=1024):
    beta_sq = beta ** 2
    tp, fp, fn = _counts(outputs, targets, tile_rows=tile_rows)
    precision = tp / (tp + fp)
    recall = tp / (tp + fn)
    return (1.0 + beta_sq) * (precision * recall) / (beta_sq * precision + recall)


def _fscore_ref(outputs, targets, beta=1):
    # pure-JAX reference mirroring the PyTorch semantics
    beta_sq = beta ** 2
    ob = jnp.where(outputs.astype(jnp.float32) >= 0.5, 1.0, 0.0).reshape(-1)
    t = targets.astype(jnp.float32).reshape(-1)
    pos = t == 1.0
    tp = jnp.sum(jnp.where(pos & (ob == t), 1.0, 0.0))
    fp = jnp.sum(jnp.where((~pos) & (ob != t), 1.0, 0.0))
    fn = jnp.sum(jnp.where(pos & (ob != t), 1.0, 0.0))
    precision = tp / (tp + fp)
    recall = tp / (tp + fn)
    return (1.0 + beta_sq) * (precision * recall) / (beta_sq * precision + recall)


if __name__ == "__main__":
    key = jax.random.PRNGKey(0)
    k1, k2, k3, k4 = jax.random.split(key, 4)

    # Main test: NCHW inputs, values in [0, 1]; targets are hard 0/1 labels.
    outputs = jax.random.uniform(k1, (2, 4, 16, 16), dtype=jnp.float32)
    targets = (jax.random.uniform(k2, (2, 4, 16, 16)) > 0.5).astype(jnp.float32)
    f1 = jax.block_until_ready(fscore(outputs, targets, beta=1))
    ref = jax.block_until_ready(_fscore_ref(outputs, targets, beta=1))
    assert jnp.allclose(f1, ref, atol=1e-6), (f1, ref)

    # Odd-shaped test: exercises the lane-pad + ragged-row masking paths.
    outputs2 = jax.random.uniform(k3, (2, 3, 17, 13), dtype=jnp.float32)
    targets2 = (jax.random.uniform(k4, (2, 3, 17, 13)) > 0.5).astype(jnp.float32)
    f1b = jax.block_until_ready(fscore(outputs2, targets2, beta=1))
    refb = jax.block_until_ready(_fscore_ref(outputs2, targets2, beta=1))
    assert jnp.allclose(f1b, refb, atol=1e-6), (f1b, refb)

    print("KERNEL_OK")
</pallas_src>

<mosaic_0001>
module attributes {stable_mosaic.version = 11 : i64} {
  func.func @_counts_kernel(%arg0: i32, %arg1: i32, %arg2: memref<16x128xf32, #tpu.memory_space<vmem>>, %arg3: memref<16x128xf32, #tpu.memory_space<vmem>>, %arg4: memref<1x1x1xi32, #tpu.memory_space<vmem>>, %arg5: memref<1x1x1xi32, #tpu.memory_space<vmem>>, %arg6: memref<1x1x1xi32, #tpu.memory_space<vmem>>, %arg7: memref<16x128xi32, #tpu.memory_space<vmem>>, %arg8: memref<16x128xi32, #tpu.memory_space<vmem>>, %arg9: memref<16x128xi32, #tpu.memory_space<vmem>>) attributes {dimension_semantics = [#tpu.dimension_semantics<parallel>, #tpu.dimension_semantics<arbitrary>], iteration_bounds = array<i64: 2, 1>, scalar_prefetch = 0 : i64, scratch_operands = 3 : i64, tpu.core_type = #tpu.core_type<tc>, window_params = [{transform_indices = @transform_0, window_bounds = array<i64: 16, 128>}, {transform_indices = @transform_1, window_bounds = array<i64: 16, 128>}, {transform_indices = @transform_2, window_bounds = array<i64: 1, 1, 1>}, {transform_indices = @transform_3, window_bounds = array<i64: 1, 1, 1>}, {transform_indices = @transform_4, window_bounds = array<i64: 1, 1, 1>}]} {
    %c0_i32 = arith.constant 0 : i32
    %0 = arith.cmpi eq, %arg1, %c0_i32 : i32
    %1 = arith.extui %0 : i1 to i32
    %c0_i32_0 = arith.constant 0 : i32
    %2 = arith.cmpi ne, %1, %c0_i32_0 : i32
    scf.if %2 {
      %c0_i32_22 = arith.constant 0 : i32
      %42 = vector.broadcast %c0_i32_22 : i32 to vector<16x128xi32>
      %c0_23 = arith.constant 0 : index
      %c0_24 = arith.constant 0 : index
      %43 = vector.load %arg7[%c0_23, %c0_24] : memref<16x128xi32, #tpu.memory_space<vmem>>, vector<16x128xi32>
      tpu.vector_store %arg7[%c0_23, %c0_24], %42 {strides = array<i32>} : memref<16x128xi32, #tpu.memory_space<vmem>>, vector<16x128xi32>,
      %c0_i32_25 = arith.constant 0 : i32
      %44 = vector.broadcast %c0_i32_25 : i32 to vector<16x128xi32>
      %c0_26 = arith.constant 0 : index
      %c0_27 = arith.constant 0 : index
      %45 = vector.load %arg8[%c0_26, %c0_27] : memref<16x128xi32, #tpu.memory_space<vmem>>, vector<16x128xi32>
      tpu.vector_store %arg8[%c0_26, %c0_27], %44 {strides = array<i32>} : memref<16x128xi32, #tpu.memory_space<vmem>>, vector<16x128xi32>,
      %c0_i32_28 = arith.constant 0 : i32
      %46 = vector.broadcast %c0_i32_28 : i32 to vector<16x128xi32>
      %c0_29 = arith.constant 0 : index
      %c0_30 = arith.constant 0 : index
      %47 = vector.load %arg9[%c0_29, %c0_30] : memref<16x128xi32, #tpu.memory_space<vmem>>, vector<16x128xi32>
      tpu.vector_store %arg9[%c0_29, %c0_30], %46 {strides = array<i32>} : memref<16x128xi32, #tpu.memory_space<vmem>>, vector<16x128xi32>,
    } else {
    }
    %c0 = arith.constant 0 : index
    %c0_1 = arith.constant 0 : index
    %3 = vector.load %arg2[%c0, %c0_1] : memref<16x128xf32, #tpu.memory_space<vmem>>, vector<16x128xf32>
    %c0_2 = arith.constant 0 : index
    %c0_3 = arith.constant 0 : index
    %4 = vector.load %arg3[%c0_2, %c0_3] : memref<16x128xf32, #tpu.memory_space<vmem>>, vector<16x128xf32>
    %cst = arith.constant 5.000000e-01 : f32
    %5 = vector.broadcast %cst : f32 to vector<16x128xf32>
    %6 = arith.cmpf oge, %3, %5 : vector<16x128xf32>
    %cst_4 = arith.constant 1.000000e+00 : f32
    %cst_5 = arith.constant 0.000000e+00 : f32
    %7 = vector.broadcast %cst_4 : f32 to vector<16x128xf32>
    %8 = vector.broadcast %cst_5 : f32 to vector<16x128xf32>
    %9 = arith.select %6, %7, %8 : vector<16x128xi1>, vector<16x128xf32>
    %cst_6 = arith.constant 1.000000e+00 : f32
    %10 = vector.broadcast %cst_6 : f32 to vector<16x128xf32>
    %11 = arith.cmpf oeq, %4, %10 : vector<16x128xf32>
    %12 = arith.extui %11 : vector<16x128xi1> to vector<16x128xi32>
    %13 = arith.cmpf one, %9, %4 : vector<16x128xf32>
    %14 = arith.extui %13 : vector<16x128xi1> to vector<16x128xi32>
    %15 = arith.muli %12, %14 : vector<16x128xi32>
    %16 = arith.subi %12, %15 : vector<16x128xi32>
    %17 = arith.subi %14, %15 : vector<16x128xi32>
    %c1_i32 = arith.constant 1 : i32
    %18 = arith.muli %arg0, %c1_i32 : i32
    %19 = arith.addi %18, %arg1 : i32
    %c16_i32 = arith.constant 16 : i32
    %20 = arith.muli %19, %c16_i32 : i32
    %21 = tpu.iota {dimensions = array<i32: 0>} : vector<16x128xi32>
    %22 = vector.broadcast %20 : i32 to vector<16x128xi32>
    %23 = arith.addi %22, %21 : vector<16x128xi32>
    %c16_i32_7 = arith.constant 16 : i32
    %24 = vector.broadcast %c16_i32_7 : i32 to vector<16x128xi32>
    %25 = arith.cmpi slt, %23, %24 : vector<16x128xi32>
    %26 = arith.extui %25 : vector<16x128xi1> to vector<16x128xi32>
    %27 = arith.muli %16, %26 : vector<16x128xi32>
    %28 = arith.muli %17, %26 : vector<16x128xi32>
    %29 = arith.muli %15, %26 : vector<16x128xi32>
    %c0_8 = arith.constant 0 : index
    %c0_9 = arith.constant 0 : index
    %30 = vector.load %arg7[%c0_8, %c0_9] : memref<16x128xi32, #tpu.memory_space<vmem>>, vector<16x128xi32>
    %31 = arith.addi %30, %27 : vector<16x128xi32>
    %c0_10 = arith.constant 0 : index
    %c0_11 = arith.constant 0 : index
    %32 = vector.load %arg7[%c0_10, %c0_11] : memref<16x128xi32, #tpu.memory_space<vmem>>, vector<16x128xi32>
    tpu.vector_store %arg7[%c0_10, %c0_11], %31 {strides = array<i32>} : memref<16x128xi32, #tpu.memory_space<vmem>>, vector<16x128xi32>,
    %c0_12 = arith.constant 0 : index
    %c0_13 = arith.constant 0 : index
    %33 = vector.load %arg8[%c0_12, %c0_13] : memref<16x128xi32, #tpu.memory_space<vmem>>, vector<16x128xi32>
    %34 = arith.addi %33, %28 : vector<16x128xi32>
    %c0_14 = arith.constant 0 : index
    %c0_15 = arith.constant 0 : index
    %35 = vector.load %arg8[%c0_14, %c0_15] : memref<16x128xi32, #tpu.memory_space<vmem>>, vector<16x128xi32>
    tpu.vector_store %arg8[%c0_14, %c0_15], %34 {strides = array<i32>} : memref<16x128xi32, #tpu.memory_space<vmem>>, vector<16x128xi32>,
    %c0_16 = arith.constant 0 : index
    %c0_17 = arith.constant 0 : index
    %36 = vector.load %arg9[%c0_16, %c0_17] : memref<16x128xi32, #tpu.memory_space<vmem>>, vector<16x128xi32>
    %37 = arith.addi %36, %29 : vector<16x128xi32>
    %c0_18 = arith.constant 0 : index
    %c0_19 = arith.constant 0 : index
    %38 = vector.load %arg9[%c0_18, %c0_19] : memref<16x128xi32, #tpu.memory_space<vmem>>, vector<16x128xi32>
    tpu.vector_store %arg9[%c0_18, %c0_19], %37 {strides = array<i32>} : memref<16x128xi32, #tpu.memory_space<vmem>>, vector<16x128xi32>,
    %c0_i32_20 = arith.constant 0 : i32
    %39 = arith.cmpi eq, %arg1, %c0_i32_20 : i32
    %40 = arith.extui %39 : i1 to i32
    %c0_i32_21 = arith.constant 0 : i32
    %41 = arith.cmpi ne, %40, %c0_i32_21 : i32
    scf.if %41 {
      %c0_22 = arith.constant 0 : index
      %c0_23 = arith.constant 0 : index
      %42 = vector.load %arg7[%c0_22, %c0_23] : memref<16x128xi32, #tpu.memory_space<vmem>>, vector<16x128xi32>
      %43 = vector.shape_cast %42 : vector<16x128xi32> to vector<1x16x128xi32>
      %cst_24 = arith.constant dense<0> : vector<1xi32>
      %44 = vector.multi_reduction <add>, %43, %cst_24 [1, 2] : vector<1x16x128xi32> to vector<1xi32>
      %45 = vector.shape_cast %44 : vector<1xi32> to vector<1x1x1xi32>
      %46 = vector.extract %45[0, 0, 0] : i32 from vector<1x1x1xi32>
      %47 = vector.broadcast %46 : i32 to vector<1x1xi32>
      %48 = vector.shape_cast %47 : vector<1x1xi32> to vector<1x1x1xi32>
      %c0_25 = arith.constant 0 : index
      %c0_26 = arith.constant 0 : index
      %c0_27 = arith.constant 0 : index
      %49 = vector.load %arg4[%c0_25, %c0_26, %c0_27] : memref<1x1x1xi32, #tpu.memory_space<vmem>>, vector<1x1x1xi32>
      tpu.vector_store %arg4[%c0_25, %c0_26, %c0_27], %48 {strides = array<i32>} : memref<1x1x1xi32, #tpu.memory_space<vmem>>, vector<1x1x1xi32>,
      %c0_28 = arith.constant 0 : index
      %c0_29 = arith.constant 0 : index
      %50 = vector.load %arg8[%c0_28, %c0_29] : memref<16x128xi32, #tpu.memory_space<vmem>>, vector<16x128xi32>
      %51 = vector.shape_cast %50 : vector<16x128xi32> to vector<1x16x128xi32>
      %cst_30 = arith.constant dense<0> : vector<1xi32>
      %52 = vector.multi_reduction <add>, %51, %cst_30 [1, 2] : vector<1x16x128xi32> to vector<1xi32>
      %53 = vector.shape_cast %52 : vector<1xi32> to vector<1x1x1xi32>
      %54 = vector.extract %53[0, 0, 0] : i32 from vector<1x1x1xi32>
      %55 = vector.broadcast %54 : i32 to vector<1x1xi32>
      %56 = vector.shape_cast %55 : vector<1x1xi32> to vector<1x1x1xi32>
      %c0_31 = arith.constant 0 : index
      %c0_32 = arith.constant 0 : index
      %c0_33 = arith.constant 0 : index
      %57 = vector.load %arg5[%c0_31, %c0_32, %c0_33] : memref<1x1x1xi32, #tpu.memory_space<vmem>>, vector<1x1x1xi32>
      tpu.vector_store %arg5[%c0_31, %c0_32, %c0_33], %56 {strides = array<i32>} : memref<1x1x1xi32, #tpu.memory_space<vmem>>, vector<1x1x1xi32>,
      %c0_34 = arith.constant 0 : index
      %c0_35 = arith.constant 0 : index
      %58 = vector.load %arg9[%c0_34, %c0_35] : memref<16x128xi32, #tpu.memory_space<vmem>>, vector<16x128xi32>
      %59 = vector.shape_cast %58 : vector<16x128xi32> to vector<1x16x128xi32>
      %cst_36 = arith.constant dense<0> : vector<1xi32>
      %60 = vector.multi_reduction <add>, %59, %cst_36 [1, 2] : vector<1x16x128xi32> to vector<1xi32>
      %61 = vector.shape_cast %60 : vector<1xi32> to vector<1x1x1xi32>
      %62 = vector.extract %61[0, 0, 0] : i32 from vector<1x1x1xi32>
      %63 = vector.broadcast %62 : i32 to vector<1x1xi32>
      %64 = vector.shape_cast %63 : vector<1x1xi32> to vector<1x1x1xi32>
      %c0_37 = arith.constant 0 : index
      %c0_38 = arith.constant 0 : index
      %c0_39 = arith.constant 0 : index
      %65 = vector.load %arg6[%c0_37, %c0_38, %c0_39] : memref<1x1x1xi32, #tpu.memory_space<vmem>>, vector<1x1x1xi32>
      tpu.vector_store %arg6[%c0_37, %c0_38, %c0_39], %64 {strides = array<i32>} : memref<1x1x1xi32, #tpu.memory_space<vmem>>, vector<1x1x1xi32>,
    } else {
    }
    return
  }
  func.func @transform_0(%arg0: i32, %arg1: i32) -> (i32, i32) {
    %c1_i32 = arith.constant 1 : i32
    %0 = arith.muli %arg0, %c1_i32 : i32
    %1 = arith.addi %0, %arg1 : i32
    %c0_i32 = arith.constant 0 : i32
    %2 = arith.minsi %1, %c0_i32 : i32
    %c0_i32_0 = arith.constant 0 : i32
    %c0_i32_1 = arith.constant 0 : i32
    return %2, %c0_i32_0 : i32, i32
  }
  func.func @transform_1(%arg0: i32, %arg1: i32) -> (i32, i32) {
    %c1_i32 = arith.constant 1 : i32
    %0 = arith.muli %arg0, %c1_i32 : i32
    %1 = arith.addi %0, %arg1 : i32
    %c0_i32 = arith.constant 0 : i32
    %2 = arith.minsi %1, %c0_i32 : i32
    %c0_i32_0 = arith.constant 0 : i32
    %c0_i32_1 = arith.constant 0 : i32
    return %2, %c0_i32_0 : i32, i32
  }
  func.func @transform_2(%arg0: i32, %arg1: i32) -> (i32, i32, i32) {
    %c0_i32 = arith.constant 0 : i32
    %c0_i32_0 = arith.constant 0 : i32
    %c0_i32_1 = arith.constant 0 : i32
    return %arg0, %c0_i32, %c0_i32_0 : i32, i32, i32
  }
  func.func @transform_3(%arg0: i32, %arg1: i32) -> (i32, i32, i32) {
    %c0_i32 = arith.constant 0 : i32
    %c0_i32_0 = arith.constant 0 : i32
    %c0_i32_1 = arith.constant 0 : i32
    return %arg0, %c0_i32, %c0_i32_0 : i32, i32, i32
  }
  func.func @transform_4(%arg0: i32, %arg1: i32) -> (i32, i32, i32) {
    %c0_i32 = arith.constant 0 : i32
    %c0_i32_0 = arith.constant 0 : i32
    %c0_i32_1 = arith.constant 0 : i32
    return %arg0, %c0_i32, %c0_i32_0 : i32, i32, i32
  }
}

</mosaic_0001>

<llo_original>
// kernel: tpu_custom_call.1
$region0: #{tpu_custom_call.1}
  #allocation0 [shape = 'u32[]', space=smem, size = 0x4, offset = 0x4, fixed_abs, tag = 'smem constant byte address 0x4 - core index']
  #allocation1 [shape = 'u32[72,128]{1,0:T(1,128)}', space=vmem, size = 0x9000, scoped, tag = 'internal scratch']
  #allocation2 [shape = 's32[16,128]{1,0:T(8,128)}', space=vmem, size = 0x2000, scoped, tag = 'scratch operand']
  #allocation3 [shape = 's32[16,128]{1,0:T(8,128)}', space=vmem, size = 0x2000, scoped, tag = 'scratch operand']
  #allocation4 [shape = 's32[16,128]{1,0:T(8,128)}', space=vmem, size = 0x2000, scoped, tag = 'scratch operand']
  %s0 = inlined_call_operand.hbm [shape: f32[16,128], index: 0, kind: input, shape index: {}]
  %s1 = inlined_call_operand.hbm [shape: f32[16,128], index: 1, kind: input, shape index: {}]
  %s2 = inlined_call_operand.vmem [shape: s32[2,1,1], index: 2, kind: output, shape index: {0}]
  %s3 = inlined_call_operand.vmem [shape: s32[2,1,1], index: 3, kind: output, shape index: {1}]
  %s4 = inlined_call_operand.vmem [shape: s32[2,1,1], index: 4, kind: output, shape index: {2}]
  %5 = xla_tuple %s2, %s3, %s4
  %s6 = sld [smem:[#allocation0]]
  $region73: #{tpu_custom_call.1} parent=0
    _
  %s8 = ssub.s32 1, %s6
  %s9 = scalar_select 0, %s8, %s6
  $region1: #{tpu_custom_call.1} parent=0
    #allocation5 [shape = 'u8[16384]{0}', space=vmem, size = 0x4000, scoped, tag = 'input window, operand 0']
    #allocation6 [shape = 's32[2]{0}', space=sflag, size = 0x8, scoped, tag = 'scoped memory for tpu_custom_call.1']
    #allocation7 [shape = 'u8[16384]{0}', space=vmem, size = 0x4000, scoped, tag = 'input window, operand 1']
    #allocation8 [shape = 's32[2]{0}', space=sflag, size = 0x8, scoped, tag = 'scoped memory for tpu_custom_call.1']
    %10 = vsyncpa [#allocation6], 0
    %s11 = scalar_lea.sflag [#allocation6], 1
    %12 = vsyncpa %s11, 0
    %13 = vsyncpa [#allocation8], 0
    %s14 = scalar_lea.sflag [#allocation8], 1
    %15 = vsyncpa %s14, 0
    loop: start=0, step=1, limit=4
    $region2: #{tpu_custom_call.1} parent=1 // loop_pre_header
      _
    $region3: #{tpu_custom_call.1} parent=1 // loop_header
      %s17 = sphi 0, %s21
      %p18 = scmp.ge.s32.totalorder %s17, 4
      %s24 = sphi 0, %s36
      %s25 = sphi 0, %s32
      %s26 = sphi 0, %s24
      %s27 = sphi 0, %s25
      %s28 = sphi 0, %s26
      %s29 = sphi 0, %s27
      %s45 = sphi 0, %s47
      %s48 = sphi 0, %s45
      %s49 = sphi 0, %s48
      %s65 = sphi 0, %s49
      %s77 = sphi 0, %s79
      %s80 = sphi 0, %s77
      %s81 = sphi 0, %s80
      %s97 = sphi 0, %s81
      %s103 = sphi 0, %s105
      %s106 = sphi 0, %s103
      %s107 = sphi 0, %s106
      %s123 = sphi 0, %s107
      %s129 = sphi 0, %s131
      %s132 = sphi 0, %s129
      %s133 = sphi 0, %s132
      %s149 = sphi 0, %s133
      %s155 = sphi 0, %s157
      %s158 = sphi 0, %s155
      %s159 = sphi 0, %s158
      %s175 = sphi 0, %s159
    $region4: #{tpu_custom_call.1} parent=1 // loop_header_branch
      %20 = sbr.rel (%p18) target = $region8
    $region5: #{tpu_custom_call.1} parent=1 // loop_body
      %s22 = ssub.s32 %s17, 1
      %s23 = ssub.s32 %s17, 2
      %s30 = sadd.s32 1, %s25
      %p31 = scmp.ge.s32.totalorder %s30, 1
      %s32 = scalar_select %p31, 0, %s30
      %s33 = sadd.s32 1, %s24
      %s34 = scalar_select %p31, %s33, %s24
      %p35 = scmp.ge.s32.totalorder %s34, 2
      %s36 = scalar_select %p35, 0, %s34
      %s37 = sadd.s32 %s24, %s25
      %p38 = scmp.lt.s32.totalorder %s37, 0
      %s39 = scalar_select %p38, %s37, 0
      %s40 = sadd.s32 %s36, %s32
      %p41 = scmp.lt.s32.totalorder %s40, 0
      %s42 = scalar_select %p41, %s40, 0
      %s43 = ssub.s32 %s39, %s42
      %p44 = scmp.eq.s32.totalorder %s43, 0
      %s46 = sadd.s32 %s45, 1
      %s47 = scalar_select %p44, %s45, %s46
      %p50 = pneg %p44
      %p51 = scmp.eq.s32.totalorder %s17, 1
      %p52 = por %p50, %p51
      %p53 = scmp.ne.s32.totalorder %s45, %s48
      %p54 = scmp.eq.s32.totalorder %s17, 0
      %p55 = por %p53, %p54
      %p56 = scmp.ne.s32.totalorder %s45, %s48
      %p57 = scmp.eq.s32.totalorder %s22, 1
      %p58 = por %p56, %p57
      %p59 = scmp.ne.s32.totalorder %s48, %s49
      %p60 = scmp.eq.s32.totalorder %s22, 0
      %p61 = por %p59, %p60
      %p62 = scmp.ne.s32.totalorder %s48, %s49
      %p63 = scmp.eq.s32.totalorder %s23, 1
      %p64 = por %p62, %p63
      %p66 = scmp.ne.s32.totalorder %s49, %s65
      %p67 = scmp.eq.s32.totalorder %s23, 0
      %p68 = por %p66, %p67
      %s69 = sadd.s32 %s24, %s25
      %p70 = scmp.lt.s32.totalorder %s69, 0
      %s71 = scalar_select %p70, %s69, 0
      %s72 = sadd.s32 %s36, %s32
      %p73 = scmp.lt.s32.totalorder %s72, 0
      %s74 = scalar_select %p73, %s72, 0
      %s75 = ssub.s32 %s71, %s74
      %p76 = scmp.eq.s32.totalorder %s75, 0
      %s78 = sadd.s32 %s77, 1
      %s79 = scalar_select %p76, %s77, %s78
      %p82 = pneg %p76
      %p83 = scmp.eq.s32.totalorder %s17, 1
      %p84 = por %p82, %p83
      %p85 = scmp.ne.s32.totalorder %s77, %s80
      %p86 = scmp.eq.s32.totalorder %s17, 0
      %p87 = por %p85, %p86
      %p88 = scmp.ne.s32.totalorder %s77, %s80
      %p89 = scmp.eq.s32.totalorder %s22, 1
      %p90 = por %p88, %p89
      %p91 = scmp.ne.s32.totalorder %s80, %s81
      %p92 = scmp.eq.s32.totalorder %s22, 0
      %p93 = por %p91, %p92
      %p94 = scmp.ne.s32.totalorder %s80, %s81
      %p95 = scmp.eq.s32.totalorder %s23, 1
      %p96 = por %p94, %p95
      %p98 = scmp.ne.s32.totalorder %s81, %s97
      %p99 = scmp.eq.s32.totalorder %s23, 0
      %p100 = por %p98, %p99
      %s101 = ssub.s32 %s24, %s36
      %p102 = scmp.eq.s32.totalorder %s101, 0
      %s104 = sadd.s32 %s103, 1
      %s105 = scalar_select %p102, %s103, %s104
      %p108 = pneg %p102
      %p109 = scmp.eq.s32.totalorder %s17, 1
      %p110 = por %p108, %p109
      %p111 = scmp.ne.s32.totalorder %s103, %s106
      %p112 = scmp.eq.s32.totalorder %s17, 0
      %p113 = por %p111, %p112
      %p114 = scmp.ne.s32.totalorder %s103, %s106
      %p115 = scmp.eq.s32.totalorder %s22, 1
      %p116 = por %p114, %p115
      %p117 = scmp.ne.s32.totalorder %s106, %s107
      %p118 = scmp.eq.s32.totalorder %s22, 0
      %p119 = por %p117, %p118
      %p120 = scmp.ne.s32.totalorder %s106, %s107
      %p121 = scmp.eq.s32.totalorder %s23, 1
      %p122 = por %p120, %p121
      %p124 = scmp.ne.s32.totalorder %s107, %s123
      %p125 = scmp.eq.s32.totalorder %s23, 0
      %p126 = por %p124, %p125
      %s127 = ssub.s32 %s24, %s36
      %p128 = scmp.eq.s32.totalorder %s127, 0
      %s130 = sadd.s32 %s129, 1
      %s131 = scalar_select %p128, %s129, %s130
      %p134 = pneg %p128
      %p135 = scmp.eq.s32.totalorder %s17, 1
      %p136 = por %p134, %p135
      %p137 = scmp.ne.s32.totalorder %s129, %s132
      %p138 = scmp.eq.s32.totalorder %s17, 0
      %p139 = por %p137, %p138
      %p140 = scmp.ne.s32.totalorder %s129, %s132
      %p141 = scmp.eq.s32.totalorder %s22, 1
      %p142 = por %p140, %p141
      %p143 = scmp.ne.s32.totalorder %s132, %s133
      %p144 = scmp.eq.s32.totalorder %s22, 0
      %p145 = por %p143, %p144
      %p146 = scmp.ne.s32.totalorder %s132, %s133
      %p147 = scmp.eq.s32.totalorder %s23, 1
      %p148 = por %p146, %p147
      %p150 = scmp.ne.s32.totalorder %s133, %s149
      %p151 = scmp.eq.s32.totalorder %s23, 0
      %p152 = por %p150, %p151
      %s153 = ssub.s32 %s24, %s36
      %p154 = scmp.eq.s32.totalorder %s153, 0
      %s156 = sadd.s32 %s155, 1
      %s157 = scalar_select %p154, %s155, %s156
      %p160 = pneg %p154
      %p161 = scmp.eq.s32.totalorder %s17, 1
      %p162 = por %p160, %p161
      %p163 = scmp.ne.s32.totalorder %s155, %s158
      %p164 = scmp.eq.s32.totalorder %s17, 0
      %p165 = por %p163, %p164
      %p166 = scmp.ne.s32.totalorder %s155, %s158
      %p167 = scmp.eq.s32.totalorder %s22, 1
      %p168 = por %p166, %p167
      %p169 = scmp.ne.s32.totalorder %s158, %s159
      %p170 = scmp.eq.s32.totalorder %s22, 0
      %p171 = por %p169, %p170
      %p172 = scmp.ne.s32.totalorder %s158, %s159
      %p173 = scmp.eq.s32.totalorder %s23, 1
      %p174 = por %p172, %p173
      %p176 = scmp.ne.s32.totalorder %s159, %s175
      %p177 = scmp.eq.s32.totalorder %s23, 0
      %p178 = por %p176, %p177
      %p179 = scmp.le.s32.totalorder 1, %s17
      %p180 = scmp.lt.s32.totalorder %s17, 3
      %p181 = pnand %p179, %p180
      %p182 = pneg %p181
      // Predicated region
      $region9: #{tpu_custom_call.1} parent=5 // pred_check
        _
      $region10: #{tpu_custom_call.1} parent=5 // pred_check_branch
        %184 = sbr.rel (%p181) target = $region12
      $region11: #{tpu_custom_call.1} parent=5 // pred_region
        %s185 = ssub.s32 %s17, 1
      $region12: #{tpu_custom_call.1} parent=5 // pred_fallthru
        _
      %p186 = scmp.lt.s32.totalorder %s17, 2
      // Predicated region
      $region13: #{tpu_custom_call.1} parent=5 // pred_check
        %p187 = pneg %p186
      $region14: #{tpu_custom_call.1} parent=5 // pred_check_branch
        %189 = sbr.rel (%p187) target = $region16
      $region15: #{tpu_custom_call.1} parent=5 // pred_region
        // Predicated region
        $region17: #{tpu_custom_call.1} parent=15 // pred_check
          %p190 = pneg %p55
        $region18: #{tpu_custom_call.1} parent=15 // pred_check_branch
          %192 = sbr.rel (%p190) target = $region20
        $region19: #{tpu_custom_call.1} parent=15 // pred_region
          %s193 = sand.u32 %s45, 1
          %s194 = scalar_lea.sflag [#allocation6], %s193
          %s195 = sand.u32 %s45, 1
          %s196 = smul.addr %s195, 16
          %s197 = scalar_lea.vmem [#allocation5], %s196
          %s198 = sadd.s32 %s24, %s25
          %p199 = scmp.lt.s32.totalorder %s198, 0
          %s200 = scalar_select %p199, %s198, 0
          %s201 = smul.u32 2, %s200
          %203 = vsyncadd %s194, 0
          %s204 = smul.addr %s201, 8
          %s205 = scalar_lea.hbm %s0, %s204
          %s206 = sshll.u32 %s205, 4
          %s207 = int_to_ptr.hbm [resolvable:$true] %s206
          %s208 = sshll.u32 %s197, 4
          %s209 = int_to_ptr.vmem [resolvable:$true] %s208
          %214 = dma.hbm_to_vmem [thread:$0]  %s207, 256, %s209, %s194, 128, 128, 8
        $region20: #{tpu_custom_call.1} parent=15 // pred_fallthru
          _
        // Predicated region
        $region21: #{tpu_custom_call.1} parent=15 // pred_check
          %p215 = pneg %p87
        $region22: #{tpu_custom_call.1} parent=15 // pred_check_branch
          %217 = sbr.rel (%p215) target = $region24
        $region23: #{tpu_custom_call.1} parent=15 // pred_region
          %s218 = sand.u32 %s77, 1
          %s219 = scalar_lea.sflag [#allocation8], %s218
          %s220 = sand.u32 %s77, 1
          %s221 = smul.addr %s220, 16
          %s222 = scalar_lea.vmem [#allocation7], %s221
          %s223 = sadd.s32 %s24, %s25
          %p224 = scmp.lt.s32.totalorder %s223, 0
          %s225 = scalar_select %p224, %s223, 0
          %s226 = smul.u32 2, %s225
          %228 = vsyncadd %s219, 0
          %s229 = smul.addr %s226, 8
          %s230 = scalar_lea.hbm %s1, %s229
          %s231 = sshll.u32 %s230, 4
          %s232 = int_to_ptr.hbm [resolvable:$true] %s231
          %s233 = sshll.u32 %s222, 4
          %s234 = int_to_ptr.vmem [resolvable:$true] %s233
          %239 = dma.hbm_to_vmem [thread:$0]  %s232, 256, %s234, %s219, 128, 128, 8
        $region24: #{tpu_custom_call.1} parent=15 // pred_fallthru
          _
      $region16: #{tpu_custom_call.1} parent=5 // pred_fallthru
        _
      %p240 = scmp.le.s32.totalorder 1, %s17
      %p241 = scmp.lt.s32.totalorder %s17, 3
      %p242 = pnand %p240, %p241
      %p243 = pneg %p242
      // Predicated region
      $region25: #{tpu_custom_call.1} parent=5 // pred_check
        _
      $region26: #{tpu_custom_call.1} parent=5 // pred_check_branch
        %245 = sbr.rel (%p242) target = $region28
      $region27: #{tpu_custom_call.1} parent=5 // pred_region
        %s246 = ssub.s32 %s17, 1
        %s247 = sand.u32 %s48, 1
        %s248 = scalar_lea.sflag [#allocation6], %s247
        %s249 = sand.u32 %s48, 1
        %s250 = smul.addr %s249, 16
        %s251 = scalar_lea.vmem [#allocation5], %s250
        // Predicated region
        $region29: #{tpu_custom_call.1} parent=27 // pred_check
          %p252 = pneg %p61
        $region30: #{tpu_custom_call.1} parent=27 // pred_check_branch
          %254 = sbr.rel (%p252) target = $region32
        $region31: #{tpu_custom_call.1} parent=27 // pred_region
          %256 = dma.done %s248, 256
        $region32: #{tpu_custom_call.1} parent=27 // pred_fallthru
          _
        %s257 = sand.u32 %s80, 1
        %s258 = scalar_lea.sflag [#allocation8], %s257
        %s259 = sand.u32 %s80, 1
        %s260 = smul.addr %s259, 16
        %s261 = scalar_lea.vmem [#allocation7], %s260
        // Predicated region
        $region33: #{tpu_custom_call.1} parent=27 // pred_check
          %p262 = pneg %p93
        $region34: #{tpu_custom_call.1} parent=27 // pred_check_branch
          %264 = sbr.rel (%p262) target = $region36
        $region35: #{tpu_custom_call.1} parent=27 // pred_region
          %266 = dma.done %s258, 256
        $region36: #{tpu_custom_call.1} parent=27 // pred_fallthru
          _
        %s267 = sand.u32 %s48, 1
        %s268 = scalar_lea.sflag [#allocation6], %s267
        %s269 = sand.u32 %s48, 1
        %s270 = smul.addr %s269, 16
        %s271 = scalar_lea.vmem [#allocation5], %s270
        %p272 = pneg %p61
        %p273 = pneg %p58
        %s274 = sand.u32 %s80, 1
        %s275 = scalar_lea.sflag [#allocation8], %s274
        %s276 = sand.u32 %s80, 1
        %s277 = smul.addr %s276, 16
        %s278 = scalar_lea.vmem [#allocation7], %s277
        %p279 = pneg %p93
        %p280 = pneg %p90
        %p281 = pneg %p119
        %p282 = pneg %p116
        %p283 = scmp.lt.s32.totalorder %s26, 1
        %s284 = scalar_select %p283, %s26, 1
        %s285 = scalar_lea.vmem %s2, %s284
        %p286 = pneg %p145
        %p287 = pneg %p142
        %p288 = scmp.lt.s32.totalorder %s26, 1
        %s289 = scalar_select %p288, %s26, 1
        %s290 = scalar_lea.vmem %s3, %s289
        %p291 = pneg %p171
        %p292 = pneg %p168
        %p293 = scmp.lt.s32.totalorder %s26, 1
        %s294 = scalar_select %p293, %s26, 1
        %s295 = scalar_lea.vmem %s4, %s294
        %s296 = sadd.s32 %s26, %s27
        %p297 = scmp.lt.s32.totalorder %s296, 0
        %s298 = scalar_select %p297, %s296, 0
        %s299 = smul.u32 2, %s298
        %s300 = sadd.s32 %s26, %s27
        %p301 = scmp.lt.s32.totalorder %s300, 0
        %s302 = scalar_select %p301, %s300, 0
        %s303 = smul.u32 2, %s302
        %p304 = scmp.lt.s32.totalorder %s26, 1
        %s305 = scalar_select %p304, %s26, 1
        %s306 = scalar_lea.vmem %s2, %s305
        %p307 = scmp.lt.s32.totalorder %s26, 1
        %s308 = scalar_select %p307, %s26, 1
        %s309 = scalar_lea.vmem %s3, %s308
        %p310 = scmp.lt.s32.totalorder %s26, 1
        %s311 = scalar_select %p310, %s26, 1
        %s312 = scalar_lea.vmem %s4, %s311
        %p313 = scmp.eq.s32.totalorder %s27, 0
        // Predicated region
        $region37: #{tpu_custom_call.1} parent=27 // pred_check
          %p314 = pneg %p313
        $region38: #{tpu_custom_call.1} parent=27 // pred_check_branch
          %316 = sbr.rel (%p314) target = $region40
        $region39: #{tpu_custom_call.1} parent=27 // pred_region
          %317 = vst [vmem:[#allocation2] sm:$0xff] 0
          %318 = vst [vmem:[#allocation2 + $0x8] sm:$0xff] 0
          %319 = vst [vmem:[#allocation3] sm:$0xff] 0
          %320 = vst [vmem:[#allocation3 + $0x8] sm:$0xff] 0
          %321 = vst [vmem:[#allocation4] sm:$0xff] 0
          %322 = vst [vmem:[#allocation4 + $0x8] sm:$0xff] 0
        $region40: #{tpu_custom_call.1} parent=27 // pred_fallthru
          _
        %v323 = vld [vmem:[%s251] sm:$0xff]
        %v324 = vld [vmem:[%s251 + $0x8] sm:$0xff]
        %v325 = vld [vmem:[%s261] sm:$0xff]
        %v326 = vld [vmem:[%s261 + $0x8] sm:$0xff]
        %vm327 = vcmp.ge.f32.partialorder %v323, 0.5
        %vm328 = vcmp.ge.f32.partialorder %v324, 0.5
        %v329 = vsel %vm327, 1.0, 0.0
        %v330 = vsel %vm328, 1.0, 0.0
        %vm331 = vcmp.eq.f32.partialorder %v325, 1.0
        %vm332 = vcmp.eq.f32.partialorder %v326, 1.0
        %v333 = vsel %vm331, 1, 0
        %v334 = vsel %vm332, 1, 0
        %vm335 = vcmp.ne.f32.partialorder %v329, %v325
        %vm336 = vcmp.ne.f32.partialorder %v330, %v326
        %v337 = vsel %vm335, 1, 0
        %v338 = vsel %vm336, 1, 0
        %v339 = vmul.u32 %v333, %v337
        %v340 = vmul.u32 %v334, %v338
        %v341 = vsub.s32 %v333, %v339
        %v342 = vsub.s32 %v334, %v340
        %v343 = vsub.s32 %v337, %v339
        %v344 = vsub.s32 %v338, %v340
        %s345 = sadd.s32 %s26, %s27
        %s346 = smul.u32 %s345, 16
        %v347 = vlaneseq
        %v348 = vshrl.u32 %v347, 7
        %v349 = vadd.s32 %v348, 8
        %v350 = vstv %s346
        %v351 = vadd.s32 %v350, %v348
        %v352 = vadd.s32 %v350, %v349
        %vm353 = vcmp.lt.s32.totalorder %v351, 16
        %vm354 = vcmp.lt.s32.totalorder %v352, 16
        %v355 = vsel %vm353, 1, 0
        %v356 = vsel %vm354, 1, 0
        %v357 = vmul.u32 %v341, %v355
        %v358 = vmul.u32 %v342, %v356
        %v359 = vmul.u32 %v343, %v355
        %v360 = vmul.u32 %v344, %v356
        %v361 = vmul.u32 %v339, %v355
        %v362 = vmul.u32 %v340, %v356
        %v363 = vld [vmem:[#allocation2] sm:$0xff]
        %v364 = vld [vmem:[#allocation2 + $0x8] sm:$0xff]
        %v365 = vadd.s32 %v363, %v357
        %v366 = vadd.s32 %v364, %v358
        %367 = vst [vmem:[#allocation2] sm:$0xff] %v365
        %368 = vst [vmem:[#allocation2 + $0x8] sm:$0xff] %v366
        %v369 = vld [vmem:[#allocation3] sm:$0xff]
        %v370 = vld [vmem:[#allocation3 + $0x8] sm:$0xff]
        %v371 = vadd.s32 %v369, %v359
        %v372 = vadd.s32 %v370, %v360
        %373 = vst [vmem:[#allocation3] sm:$0xff] %v371
        %374 = vst [vmem:[#allocation3 + $0x8] sm:$0xff] %v372
        %v375 = vld [vmem:[#allocation4] sm:$0xff]
        %v376 = vld [vmem:[#allocation4 + $0x8] sm:$0xff]
        %v377 = vadd.s32 %v375, %v361
        %v378 = vadd.s32 %v376, %v362
        %379 = vst [vmem:[#allocation4] sm:$0xff] %v377
        %380 = vst [vmem:[#allocation4 + $0x8] sm:$0xff] %v378
        // Predicated region
        $region41: #{tpu_custom_call.1} parent=27 // pred_check
          %p381 = pneg %p313
        $region42: #{tpu_custom_call.1} parent=27 // pred_check_branch
          %383 = sbr.rel (%p381) target = $region44
        $region43: #{tpu_custom_call.1} parent=27 // pred_region
          %v384 = vld [vmem:[#allocation2] sm:$0xff]
          %v385 = vld [vmem:[#allocation2 + $0x8] sm:$0xff]
          %v386 = vadd.s32 %v384, %v385
          %v387 = vand.u32 %v386, 65535
          %v388 = vshrl.u32 %v386, 16
          %v389 = vcvt.s32.f32 %v387
          %v390 = vcvt.s32.f32 %v388
          %391 = vadd.xlane.f32.xlu0 %v389
          %v392 = vpop.xlane.xlu0 %391
          %393 = vadd.xlane.f32.xlu0 %v390
          %v394 = vpop.xlane.xlu0 %393
          %v395 = vcvt.f32.s32 %v392
          %v396 = vcvt.f32.s32 %v394
          %v397 = vshll.u32 %v396, 16
          %v398 = vadd.s32 %v397, %v395
          %v399 = vrot.slane %v398, 4
          %v400 = vadd.s32 %v398, %v399
          %v401 = vrot.slane %v400, 2
          %v402 = vadd.s32 %v400, %v401
          %v403 = vrot.slane %v402, 1
          %v404 = vadd.s32 %v402, %v403
          %s405 = vtos %v404
          %v406 = vstv %s405
          %vm407 = vcmask 0
          %408 = vst.msk [vmem:[%s306] sm:$0x1] %vm407, %v406
          %v409 = vld [vmem:[#allocation3] sm:$0xff]
          %v410 = vld [vmem:[#allocation3 + $0x8] sm:$0xff]
          %v411 = vadd.s32 %v409, %v410
          %v412 = vand.u32 %v411, 65535
          %v413 = vshrl.u32 %v411, 16
          %v414 = vcvt.s32.f32 %v412
          %v415 = vcvt.s32.f32 %v413
          %416 = vadd.xlane.f32.xlu0 %v414
          %v417 = vpop.xlane.xlu0 %416
          %418 = vadd.xlane.f32.xlu0 %v415
          %v419 = vpop.xlane.xlu0 %418
          %v420 = vcvt.f32.s32 %v417
          %v421 = vcvt.f32.s32 %v419
          %v422 = vshll.u32 %v421, 16
          %v423 = vadd.s32 %v422, %v420
          %v424 = vrot.slane %v423, 4
          %v425 = vadd.s32 %v423, %v424
          %v426 = vrot.slane %v425, 2
          %v427 = vadd.s32 %v425, %v426
          %v428 = vrot.slane %v427, 1
          %v429 = vadd.s32 %v427, %v428
          %s430 = vtos %v429
          %v431 = vstv %s430
          %432 = vst.msk [vmem:[%s309] sm:$0x1] %vm407, %v431
          %v433 = vld [vmem:[#allocation4] sm:$0xff]
          %v434 = vld [vmem:[#allocation4 + $0x8] sm:$0xff]
          %v435 = vadd.s32 %v433, %v434
          %v436 = vand.u32 %v435, 65535
          %v437 = vshrl.u32 %v435, 16
          %v438 = vcvt.s32.f32 %v436
          %v439 = vcvt.s32.f32 %v437
          %440 = vadd.xlane.f32.xlu0 %v438
          %v441 = vpop.xlane.xlu0 %440
          %442 = vadd.xlane.f32.xlu0 %v439
          %v443 = vpop.xlane.xlu0 %442
          %v444 = vcvt.f32.s32 %v441
          %v445 = vcvt.f32.s32 %v443
          %v446 = vshll.u32 %v445, 16
          %v447 = vadd.s32 %v446, %v444
          %v448 = vrot.slane %v447, 4
          %v449 = vadd.s32 %v447, %v448
          %v450 = vrot.slane %v449, 2
          %v451 = vadd.s32 %v449, %v450
          %v452 = vrot.slane %v451, 1
          %v453 = vadd.s32 %v451, %v452
          %s454 = vtos %v453
          %v455 = vstv %s454
          %456 = vst.msk [vmem:[%s312] sm:$0x1] %vm407, %v455
        $region44: #{tpu_custom_call.1} parent=27 // pred_fallthru
          _
        %p457 = scmp.lt.s32.totalorder %s26, 1
        %s458 = scalar_select %p457, %s26, 1
        %s459 = scalar_lea.vmem %s2, %s458
        %p460 = scmp.lt.s32.totalorder %s26, 1
        %s461 = scalar_select %p460, %s26, 1
        %s462 = scalar_lea.vmem %s3, %s461
        %p463 = scmp.lt.s32.totalorder %s26, 1
        %s464 = scalar_select %p463, %s26, 1
        %s465 = scalar_lea.vmem %s4, %s464
        // Predicated region
        $region45: #{tpu_custom_call.1} parent=27 // pred_check
          %p466 = pneg %p116
        $region46: #{tpu_custom_call.1} parent=27 // pred_check_branch
          %468 = sbr.rel (%p466) target = $region48
        $region47: #{tpu_custom_call.1} parent=27 // pred_region
          _
        $region48: #{tpu_custom_call.1} parent=27 // pred_fallthru
          _
        // Predicated region
        $region49: #{tpu_custom_call.1} parent=27 // pred_check
          %p469 = pneg %p142
        $region50: #{tpu_custom_call.1} parent=27 // pred_check_branch
          %471 = sbr.rel (%p469) target = $region52
        $region51: #{tpu_custom_call.1} parent=27 // pred_region
          _
        $region52: #{tpu_custom_call.1} parent=27 // pred_fallthru
          _
        // Predicated region
        $region53: #{tpu_custom_call.1} parent=27 // pred_check
          %p472 = pneg %p168
        $region54: #{tpu_custom_call.1} parent=27 // pred_check_branch
          %474 = sbr.rel (%p472) target = $region56
        $region55: #{tpu_custom_call.1} parent=27 // pred_region
          _
        $region56: #{tpu_custom_call.1} parent=27 // pred_fallthru
          _
      $region28: #{tpu_custom_call.1} parent=5 // pred_fallthru
        _
      %p475 = scmp.le.s32.totalorder 2, %s17
      // Predicated region
      $region57: #{tpu_custom_call.1} parent=5 // pred_check
        %p476 = pneg %p475
      $region58: #{tpu_custom_call.1} parent=5 // pred_check_branch
        %478 = sbr.rel (%p476) target = $region60
      $region59: #{tpu_custom_call.1} parent=5 // pred_region
        %s479 = ssub.s32 %s17, 2
        // Predicated region
        $region61: #{tpu_custom_call.1} parent=59 // pred_check
          %p480 = pneg %p122
        $region62: #{tpu_custom_call.1} parent=59 // pred_check_branch
          %482 = sbr.rel (%p480) target = $region64
        $region63: #{tpu_custom_call.1} parent=59 // pred_region
          %p483 = scmp.lt.s32.totalorder %s28, 1
          %s484 = scalar_select %p483, %s28, 1
          %s485 = scalar_lea.vmem %s2, %s484
        $region64: #{tpu_custom_call.1} parent=59 // pred_fallthru
          _
        // Predicated region
        $region65: #{tpu_custom_call.1} parent=59 // pred_check
          %p486 = pneg %p148
        $region66: #{tpu_custom_call.1} parent=59 // pred_check_branch
          %488 = sbr.rel (%p486) target = $region68
        $region67: #{tpu_custom_call.1} parent=59 // pred_region
          %p489 = scmp.lt.s32.totalorder %s28, 1
          %s490 = scalar_select %p489, %s28, 1
          %s491 = scalar_lea.vmem %s3, %s490
        $region68: #{tpu_custom_call.1} parent=59 // pred_fallthru
          _
        // Predicated region
        $region69: #{tpu_custom_call.1} parent=59 // pred_check
          %p492 = pneg %p174
        $region70: #{tpu_custom_call.1} parent=59 // pred_check_branch
          %494 = sbr.rel (%p492) target = $region72
        $region71: #{tpu_custom_call.1} parent=59 // pred_region
          %p495 = scmp.lt.s32.totalorder %s28, 1
          %s496 = scalar_select %p495, %s28, 1
          %s497 = scalar_lea.vmem %s4, %s496
        $region72: #{tpu_custom_call.1} parent=59 // pred_fallthru
          _
      $region60: #{tpu_custom_call.1} parent=5 // pred_fallthru
        _
    $region6: #{tpu_custom_call.1} parent=1 // loop_footer
      %s21 = sadd.s32 1, %s17
    $region7: #{tpu_custom_call.1} parent=1 // loop_footer_branch
      %16 = sbr.rel target = $region3
    $region8: #{tpu_custom_call.1} parent=1 // loop_exit
      _
    %498 = vsyncpa [#allocation6], 1
    %s499 = scalar_lea.sflag [#allocation6], 1
    %500 = vsyncpa %s499, 1
    %501 = vsyncpa [#allocation8], 1
    %s502 = scalar_lea.sflag [#allocation8], 1
    %503 = vsyncpa %s502, 1

</llo_original>
